<compile_context>
chip_gen: v7x
topology: tpu7x:2x2x1
jax: 0.10.0
libtpu: 0.0.40
codegen_flags: <defaults>
</compile_context>

<pallas_src>
import functools
import math

import jax
import jax.numpy as jnp
from jax.experimental import pallas as pl
from jax.experimental.pallas import tpu as pltpu


# ----------------------------- Pallas kernels -----------------------------

def _elu(x):
    # ELU(alpha=1): x if x > 0 else exp(x) - 1
    return jnp.where(x > 0, x, jnp.exp(jnp.minimum(x, 0.0)) - 1.0)


def _gated_body(p_ref, w_ref, b_ref, cout, activation):
    # Single MXU dot against [Wf | Wg] (bf16 operands, f32 accumulation).
    acc = jnp.dot(p_ref[...], w_ref[...],
                  preferred_element_type=jnp.float32)
    acc = acc + b_ref[...]                       # bias broadcast over rows
    feat = acc[:, :cout]
    gate = acc[:, cout:]
    if activation == "elu":
        feat = _elu(feat)
    return feat * jax.nn.sigmoid(gate)


def gated_matmul_kernel(p_ref, w_ref, b_ref, o_ref, *, cout, activation):
    """out = act(P @ Wf + bf) * sigmoid(P @ Wg + bg)."""
    o_ref[...] = _gated_body(p_ref, w_ref, b_ref, cout,
                             activation).astype(o_ref.dtype)


def gated_matmul_res_kernel(p_ref, w_ref, b_ref, r_ref, o_ref, *,
                            cout, activation):
    """Fused second block conv: elu(gated_conv(P) + residual)."""
    out = _gated_body(p_ref, w_ref, b_ref, cout, activation)
    o_ref[...] = _elu(out + r_ref[...]).astype(o_ref.dtype)


# ------------------------------ Wrappers ----------------------------------

def _round_up(x, m):
    return ((x + m - 1) // m) * m


def gated_matmul(patches, w_cat, b_cat, cout, activation, residual=None):
    """patches: (M, K) f32, w_cat: (K, 2*Cout) bf16, b_cat: (1, 2*Cout) f32."""
    M, K = patches.shape

    # Cap TM so the M grid can shard across v7x's two TensorCores while still
    # being a multiple of 8; pad M only when needed (it usually is a multiple).
    TM = min(_round_up(M, 8), 256)
    Mpad = _round_up(M, TM)

    p = patches.astype(jnp.bfloat16)
    if Mpad != M:
        p = jnp.pad(p, ((0, Mpad - M), (0, 0)))

    inputs = [p, w_cat, b_cat]
    in_specs = [
        pl.BlockSpec((TM, K), lambda i: (i, 0)),          # full-K block
        pl.BlockSpec((K, 2 * cout), lambda i: (0, 0)),    # whole weight
        pl.BlockSpec((1, 2 * cout), lambda i: (0, 0)),    # bias
    ]

    if residual is not None:
        r = residual.astype(jnp.float32)
        if Mpad != M:
            r = jnp.pad(r, ((0, Mpad - M), (0, 0)))
        inputs.append(r)
        in_specs.append(pl.BlockSpec((TM, cout), lambda i: (i, 0)))
        kernel = functools.partial(gated_matmul_res_kernel,
                                   cout=cout, activation=activation)
    else:
        kernel = functools.partial(gated_matmul_kernel,
                                   cout=cout, activation=activation)

    out = pl.pallas_call(
        kernel,
        out_shape=jax.ShapeDtypeStruct((Mpad, cout), jnp.float32),
        grid=(Mpad // TM,),
        in_specs=in_specs,
        out_specs=pl.BlockSpec((TM, cout), lambda i: (i, 0)),
        compiler_params=pltpu.CompilerParams(
            dimension_semantics=("parallel",),
            vmem_limit_bytes=48 * 1024 * 1024),
    )(*inputs)

    return out[:M] if Mpad != M else out


# --------------------------- Conv glue (JAX) -------------------------------

def spherical_pad(x, pad):
    # circular (wrap) along width, zero along height.  x: NHWC
    x = jnp.concatenate([x[:, :, -pad:, :], x, x[:, :, :pad, :]], axis=2)
    x = jnp.pad(x, ((0, 0), (pad, pad), (0, 0), (0, 0)))
    return x


def im2col(x, kh, kw, stride):
    N, H, W, C = x.shape
    Hout = (H - kh) // stride + 1
    Wout = (W - kw) // stride + 1
    cols = []
    for di in range(kh):
        for dj in range(kw):
            cols.append(x[:, di:di + stride * (Hout - 1) + 1:stride,
                          dj:dj + stride * (Wout - 1) + 1:stride, :])
    patches = jnp.concatenate(cols, axis=-1)  # (N, Hout, Wout, kh*kw*C)
    return patches.reshape(N * Hout * Wout, kh * kw * C), Hout, Wout


def gated_conv(x, p, *, stride, pad, pad_type, activation, residual=None):
    # TODO(synk): im2col in HBM is kept as JAX glue; an in-kernel gather over
    #   (kh, kw) windows would cut input traffic further but is not needed at
    #   these sizes.
    if pad > 0:
        if pad_type == "spherical":
            x = spherical_pad(x, pad)
        else:
            x = jnp.pad(x, ((0, 0), (pad, pad), (pad, pad), (0, 0)))
    patches, Hout, Wout = im2col(x, p["kh"], p["kw"], stride)
    N = x.shape[0]
    cout = p["cout"]
    res2d = None if residual is None else residual.reshape(-1, cout)
    out = gated_matmul(patches, p["w"], p["b"], cout, activation,
                       residual=res2d)
    return out.reshape(N, Hout, Wout, cout)


# ----------------------------- Parameters ----------------------------------

def init_gated_conv(key, cin, cout, k):
    kwf, kwg, kbf, kbg = jax.random.split(key, 4)
    std = math.sqrt(2.0 / (k * k * cout))          # matches module's init loop
    bound = 1.0 / math.sqrt(cin * k * k)           # default nn.Conv2d bias init
    wf = jax.random.normal(kwf, (k, k, cin, cout), jnp.float32) * std
    wg = jax.random.normal(kwg, (k, k, cin, cout), jnp.float32) * std
    bf = jax.random.uniform(kbf, (cout,), jnp.float32, -bound, bound)
    bg = jax.random.uniform(kbg, (cout,), jnp.float32, -bound, bound)
    K = k * k * cin
    # Hoisted weight prep: reshape + concat [Wf | Wg] + bf16 cast, done once.
    w_cat = jnp.concatenate([wf.reshape(K, cout), wg.reshape(K, cout)],
                            axis=1).astype(jnp.bfloat16)
    b_cat = jnp.concatenate([bf, bg]).reshape(1, 2 * cout).astype(jnp.float32)
    return dict(w=w_cat, b=b_cat, kh=k, kw=k, cout=cout)


def init_params(key, input_channels=3, inplanes=64):
    planes_list = (64, 128, 256, 512)   # hardcoded in _make_layer
    keys = jax.random.split(key, 1 + 3 * len(planes_list))
    params = {"conv1": init_gated_conv(keys[0], input_channels, inplanes, 7)}
    cin = inplanes
    ki = 1
    for li, planes in enumerate(planes_list, start=1):
        params[f"layer{li}"] = dict(
            conv1=init_gated_conv(keys[ki], cin, planes, 3),
            conv2=init_gated_conv(keys[ki + 1], planes, planes, 3),
            downsample=init_gated_conv(keys[ki + 2], cin, planes, 1),
        )
        ki += 3
        cin = planes
    return params


# ------------------------------ Forward -------------------------------------

def gated_resnet_forward(params, x_nchw):
    # External interface is NCHW (PyTorch); internal compute is NHWC.
    x = jnp.transpose(x_nchw, (0, 2, 3, 1)).astype(jnp.float32)

    # stem: GatedConv2d(cin, 64, k=7, s=2, p=3, spherical, elu)
    x = gated_conv(x, params["conv1"], stride=2, pad=3,
                   pad_type="spherical", activation="elu")

    features = []
    for li in range(1, 5):
        p = params[f"layer{li}"]
        out = gated_conv(x, p["conv1"], stride=2, pad=1,
                         pad_type="spherical", activation="elu")
        res = gated_conv(x, p["downsample"], stride=2, pad=0,
                         pad_type="zero", activation="none")
        # conv2 epilogue fuses residual add + ELU (no separate add_elu pass).
        x = gated_conv(out, p["conv2"], stride=1, pad=1,
                       pad_type="spherical", activation="none",
                       residual=res)
        features.append(jnp.transpose(x, (0, 3, 1, 2)))  # back to NCHW
    return features


# -------------------------------- Main ---------------------------------------

if __name__ == "__main__":
    key = jax.random.PRNGKey(0)
    k_params, k_x = jax.random.split(key)

    # layers=[1,1,1,1] (one block per stage), input_channels=3, inplanes=64
    params = init_params(k_params, input_channels=3, inplanes=64)
    x = jax.random.normal(k_x, (2, 3, 32, 32), jnp.float32)  # NCHW

    feats = gated_resnet_forward(params, x)
    feats = [jax.block_until_ready(f) for f in feats]

    expected = [(2, 64, 8, 8), (2, 128, 4, 4), (2, 256, 2, 2), (2, 512, 1, 1)]
    assert [tuple(f.shape) for f in feats] == expected, \
        [tuple(f.shape) for f in feats]
    assert all(bool(jnp.all(jnp.isfinite(f))) for f in feats)
    print("KERNEL_OK")
</pallas_src>

<mosaic_0001>
module attributes {stable_mosaic.version = 11 : i64} {
  func.func @gated_matmul_kernel(%arg0: i32, %arg1: memref<256x147xbf16, #tpu.memory_space<vmem>>, %arg2: memref<147x128xbf16, #tpu.memory_space<vmem>>, %arg3: memref<1x128xf32, #tpu.memory_space<vmem>>, %arg4: memref<256x64xf32, #tpu.memory_space<vmem>>) attributes {dimension_semantics = [#tpu.dimension_semantics<parallel>], iteration_bounds = array<i64: 2>, scalar_prefetch = 0 : i64, scratch_operands = 0 : i64, tpu.core_type = #tpu.core_type<tc>, window_params = [{transform_indices = @transform_0, window_bounds = array<i64: 256, 147>}, {pipeline_mode = #tpu.pipeline_mode<synchronous>, transform_indices = @transform_1, window_bounds = array<i64: 147, 128>}, {pipeline_mode = #tpu.pipeline_mode<synchronous>, transform_indices = @transform_2, window_bounds = array<i64: 1, 128>}, {transform_indices = @transform_3, window_bounds = array<i64: 256, 64>}]} {
    %c0 = arith.constant 0 : index
    %c0_0 = arith.constant 0 : index
    %0 = vector.load %arg1[%c0, %c0_0] : memref<256x147xbf16, #tpu.memory_space<vmem>>, vector<256x147xbf16>
    %c0_1 = arith.constant 0 : index
    %c0_2 = arith.constant 0 : index
    %1 = vector.load %arg2[%c0_1, %c0_2] : memref<147x128xbf16, #tpu.memory_space<vmem>>, vector<147x128xbf16>
    %cst = arith.constant dense<0.000000e+00> : vector<256x128xf32>
    %2 = tpu.matmul %0, %1, %cst {dimension_numbers = #tpu.dot_dimension_numbers<[1], [0], [0], [1], [0, 0, 1, 1], [], []>} : vector<256x147xbf16>, vector<147x128xbf16>, vector<256x128xf32> -> vector<256x128xf32>
    %c0_3 = arith.constant 0 : index
    %c0_4 = arith.constant 0 : index
    %3 = vector.load %arg3[%c0_3, %c0_4] : memref<1x128xf32, #tpu.memory_space<vmem>>, vector<1x128xf32>
    %4 = vector.broadcast %3 : vector<1x128xf32> to vector<256x128xf32>
    %5 = arith.addf %2, %4 : vector<256x128xf32>
    %6 = vector.extract_strided_slice %5 {offsets = [0, 0], sizes = [256, 64], strides = [1, 1]} : vector<256x128xf32> to vector<256x64xf32>
    %7 = vector.extract_strided_slice %5 {offsets = [0, 64], sizes = [256, 64], strides = [1, 1]} : vector<256x128xf32> to vector<256x64xf32>
    %cst_5 = arith.constant 0.000000e+00 : f32
    %8 = vector.broadcast %cst_5 : f32 to vector<256x64xf32>
    %9 = arith.cmpf ogt, %6, %8 : vector<256x64xf32>
    %cst_6 = arith.constant 0.000000e+00 : f32
    %10 = vector.broadcast %cst_6 : f32 to vector<256x64xf32>
    %11 = arith.minimumf %6, %10 : vector<256x64xf32>
    %12 = math.exp %11 : vector<256x64xf32>
    %cst_7 = arith.constant 1.000000e+00 : f32
    %13 = vector.broadcast %cst_7 : f32 to vector<256x64xf32>
    %14 = arith.subf %12, %13 : vector<256x64xf32>
    %15 = arith.select %9, %6, %14 : vector<256x64xi1>, vector<256x64xf32>
    %16 = arith.negf %7 : vector<256x64xf32>
    %17 = math.exp %16 : vector<256x64xf32>
    %cst_8 = arith.constant 1.000000e+00 : f32
    %18 = vector.broadcast %cst_8 : f32 to vector<256x64xf32>
    %19 = arith.addf %18, %17 : vector<256x64xf32>
    %20 = arith.divf %18, %19 : vector<256x64xf32>
    %21 = arith.mulf %15, %20 : vector<256x64xf32>
    %c0_9 = arith.constant 0 : index
    %c0_10 = arith.constant 0 : index
    %22 = vector.load %arg4[%c0_9, %c0_10] : memref<256x64xf32, #tpu.memory_space<vmem>>, vector<256x64xf32>
    tpu.vector_store %arg4[%c0_9, %c0_10], %21 {strides = array<i32>} : memref<256x64xf32, #tpu.memory_space<vmem>>, vector<256x64xf32>,
    return
  }
  func.func @transform_0(%arg0: i32) -> (i32, i32) {
    %c0_i32 = arith.constant 0 : i32
    %c0_i32_0 = arith.constant 0 : i32
    return %arg0, %c0_i32 : i32, i32
  }
  func.func @transform_1(%arg0: i32) -> (i32, i32) {
    %c0_i32 = arith.constant 0 : i32
    %c0_i32_0 = arith.constant 0 : i32
    %c0_i32_1 = arith.constant 0 : i32
    return %c0_i32, %c0_i32_0 : i32, i32
  }
  func.func @transform_2(%arg0: i32) -> (i32, i32) {
    %c0_i32 = arith.constant 0 : i32
    %c0_i32_0 = arith.constant 0 : i32
    %c0_i32_1 = arith.constant 0 : i32
    return %c0_i32, %c0_i32_0 : i32, i32
  }
  func.func @transform_3(%arg0: i32) -> (i32, i32) {
    %c0_i32 = arith.constant 0 : i32
    %c0_i32_0 = arith.constant 0 : i32
    return %arg0, %c0_i32 : i32, i32
  }
}

</mosaic_0001>

<llo_original>
// kernel: tpu_custom_call.1
$region0: #{tpu_custom_call.1}
  #allocation0 [shape = 'u32[]', space=smem, size = 0x4, offset = 0x4, fixed_abs, tag = 'smem constant byte address 0x4 - core index']
  #allocation1 [shape = 'u32[144,128]{1,0:T(1,128)}', space=vmem, size = 0x12000, scoped, tag = 'internal scratch']
  %s0 = inlined_call_operand.vmem [shape: bf16[512,147], index: 0, kind: input, shape index: {}]
  %s1 = inlined_call_operand.vmem [shape: bf16[147,128], index: 1, kind: input, shape index: {}]
  %s2 = inlined_call_operand.vmem [shape: f32[1,128], index: 2, kind: input, shape index: {}]
  %s3 = inlined_call_operand.vmem [shape: f32[512,64], index: 3, kind: output, shape index: {}]
  %s4 = sld [smem:[#allocation0]]
  $region45: #{tpu_custom_call.1} parent=0
    _
  %s6 = ssub.s32 1, %s4
  %s7 = scalar_select 0, %s6, %s4
  loop: start=0, step=1, limit=4
  $region2: #{tpu_custom_call.1} parent=0 // loop_pre_header
    _
  $region3: #{tpu_custom_call.1} parent=0 // loop_header
    %s9 = sphi 0, %s13
    %p10 = scmp.ge.s32.totalorder %s9, 4
    %s19 = sphi 0, %s21
    %s22 = sphi 0, %s19
    %s23 = sphi 0, %s22
    %s39 = sphi 0, %s23
    %s43 = sphi 0, %s43
    %s45 = sphi 0, %s43
    %s46 = sphi 0, %s45
    %s60 = sphi 0, %s46
    %s64 = sphi 0, %s64
    %s66 = sphi 0, %s64
    %s67 = sphi 0, %s66
    %s81 = sphi 0, %s67
    %s87 = sphi 0, %s89
    %s90 = sphi 0, %s87
    %s91 = sphi 0, %s90
    %s107 = sphi 0, %s91
  $region4: #{tpu_custom_call.1} parent=0 // loop_header_branch
    %12 = sbr.rel (%p10) target = $region8
  $region5: #{tpu_custom_call.1} parent=0 // loop_body
    %s14 = ssub.s32 %s9, 1
    %s15 = ssub.s32 %s9, 2
    %s16 = sadd.s32 %s9, 1
    %s17 = ssub.s32 %s9, %s16
    %p18 = scmp.eq.s32.totalorder %s17, 0
    %s20 = sadd.s32 %s19, 1
    %s21 = scalar_select %p18, %s19, %s20
    %p24 = pneg %p18
    %p25 = scmp.eq.s32.totalorder %s9, 1
    %p26 = por %p24, %p25
    %p27 = scmp.ne.s32.totalorder %s19, %s22
    %p28 = scmp.eq.s32.totalorder %s9, 0
    %p29 = por %p27, %p28
    %p30 = scmp.ne.s32.totalorder %s19, %s22
    %p31 = scmp.eq.s32.totalorder %s14, 1
    %p32 = por %p30, %p31
    %p33 = scmp.ne.s32.totalorder %s22, %s23
    %p34 = scmp.eq.s32.totalorder %s14, 0
    %p35 = por %p33, %p34
    %p36 = scmp.ne.s32.totalorder %s22, %s23
    %p37 = scmp.eq.s32.totalorder %s15, 1
    %p38 = por %p36, %p37
    %p40 = scmp.ne.s32.totalorder %s23, %s39
    %p41 = scmp.eq.s32.totalorder %s15, 0
    %p42 = por %p40, %p41
    %s44 = sadd.s32 %s43, 1
    %p47 = scmp.eq.s32.totalorder %s9, 1
    %p48 = scmp.ne.s32.totalorder %s43, %s45
    %p49 = scmp.eq.s32.totalorder %s9, 0
    %p50 = por %p48, %p49
    %p51 = scmp.ne.s32.totalorder %s43, %s45
    %p52 = scmp.eq.s32.totalorder %s14, 1
    %p53 = por %p51, %p52
    %p54 = scmp.ne.s32.totalorder %s45, %s46
    %p55 = scmp.eq.s32.totalorder %s14, 0
    %p56 = por %p54, %p55
    %p57 = scmp.ne.s32.totalorder %s45, %s46
    %p58 = scmp.eq.s32.totalorder %s15, 1
    %p59 = por %p57, %p58
    %p61 = scmp.ne.s32.totalorder %s46, %s60
    %p62 = scmp.eq.s32.totalorder %s15, 0
    %p63 = por %p61, %p62
    %s65 = sadd.s32 %s64, 1
    %p68 = scmp.eq.s32.totalorder %s9, 1
    %p69 = scmp.ne.s32.totalorder %s64, %s66
    %p70 = scmp.eq.s32.totalorder %s9, 0
    %p71 = por %p69, %p70
    %p72 = scmp.ne.s32.totalorder %s64, %s66
    %p73 = scmp.eq.s32.totalorder %s14, 1
    %p74 = por %p72, %p73
    %p75 = scmp.ne.s32.totalorder %s66, %s67
    %p76 = scmp.eq.s32.totalorder %s14, 0
    %p77 = por %p75, %p76
    %p78 = scmp.ne.s32.totalorder %s66, %s67
    %p79 = scmp.eq.s32.totalorder %s15, 1
    %p80 = por %p78, %p79
    %p82 = scmp.ne.s32.totalorder %s67, %s81
    %p83 = scmp.eq.s32.totalorder %s15, 0
    %p84 = por %p82, %p83
    %s85 = ssub.s32 %s9, %s16
    %p86 = scmp.eq.s32.totalorder %s85, 0
    %s88 = sadd.s32 %s87, 1
    %s89 = scalar_select %p86, %s87, %s88
    %p92 = pneg %p86
    %p93 = scmp.eq.s32.totalorder %s9, 1
    %p94 = por %p92, %p93
    %p95 = scmp.ne.s32.totalorder %s87, %s90
    %p96 = scmp.eq.s32.totalorder %s9, 0
    %p97 = por %p95, %p96
    %p98 = scmp.ne.s32.totalorder %s87, %s90
    %p99 = scmp.eq.s32.totalorder %s14, 1
    %p100 = por %p98, %p99
    %p101 = scmp.ne.s32.totalorder %s90, %s91
    %p102 = scmp.eq.s32.totalorder %s14, 0
    %p103 = por %p101, %p102
    %p104 = scmp.ne.s32.totalorder %s90, %s91
    %p105 = scmp.eq.s32.totalorder %s15, 1
    %p106 = por %p104, %p105
    %p108 = scmp.ne.s32.totalorder %s91, %s107
    %p109 = scmp.eq.s32.totalorder %s15, 0
    %p110 = por %p108, %p109
    %p111 = scmp.le.s32.totalorder 1, %s9
    %p112 = scmp.lt.s32.totalorder %s9, 3
    %p113 = pnand %p111, %p112
    %p114 = pneg %p113
    // Predicated region
    $region9: #{tpu_custom_call.1} parent=5 // pred_check
      _
    $region10: #{tpu_custom_call.1} parent=5 // pred_check_branch
      %116 = sbr.rel (%p113) target = $region12
    $region11: #{tpu_custom_call.1} parent=5 // pred_region
      %s117 = ssub.s32 %s9, 1
      // Predicated region
      $region13: #{tpu_custom_call.1} parent=11 // pred_check
        %p118 = pneg %p56
      $region14: #{tpu_custom_call.1} parent=11 // pred_check_branch
        %120 = sbr.rel (%p118) target = $region16
      $region15: #{tpu_custom_call.1} parent=11 // pred_region
        _
      $region16: #{tpu_custom_call.1} parent=11 // pred_fallthru
        _
      // Predicated region
      $region17: #{tpu_custom_call.1} parent=11 // pred_check
        %p121 = pneg %p77
      $region18: #{tpu_custom_call.1} parent=11 // pred_check_branch
        %123 = sbr.rel (%p121) target = $region20
      $region19: #{tpu_custom_call.1} parent=11 // pred_region
        _
      $region20: #{tpu_custom_call.1} parent=11 // pred_fallthru
        _
    $region12: #{tpu_custom_call.1} parent=5 // pred_fallthru
      _
    %p124 = scmp.lt.s32.totalorder %s9, 2
    // Predicated region
    $region21: #{tpu_custom_call.1} parent=5 // pred_check
      %p125 = pneg %p124
    $region22: #{tpu_custom_call.1} parent=5 // pred_check_branch
      %127 = sbr.rel (%p125) target = $region24
    $region23: #{tpu_custom_call.1} parent=5 // pred_region
      // Predicated region
      $region25: #{tpu_custom_call.1} parent=23 // pred_check
        %p128 = pneg %p29
      $region26: #{tpu_custom_call.1} parent=23 // pred_check_branch
        %130 = sbr.rel (%p128) target = $region28
      $region27: #{tpu_custom_call.1} parent=23 // pred_region
        %s131 = smul.u32 32, %s9
        %p132 = scmp.lt.s32.totalorder %s131, 63
        %s133 = scalar_select %p132, %s131, 63
        %s134 = smul.addr %s133, 2
        %s135 = smul.addr %s134, 4
        %s136 = scalar_lea.vmem %s0, %s135
        %s137 = smul.u32 32, %s9
      $region28: #{tpu_custom_call.1} parent=23 // pred_fallthru
        _
    $region24: #{tpu_custom_call.1} parent=5 // pred_fallthru
      _
    %p138 = scmp.le.s32.totalorder 1, %s9
    %p139 = scmp.lt.s32.totalorder %s9, 3
    %p140 = pnand %p138, %p139
    %p141 = pneg %p140
    // Predicated region
    $region29: #{tpu_custom_call.1} parent=5 // pred_check
      _
    $region30: #{tpu_custom_call.1} parent=5 // pred_check_branch
      %143 = sbr.rel (%p140) target = $region32
    $region31: #{tpu_custom_call.1} parent=5 // pred_region
      %s144 = ssub.s32 %s9, 1
      %s145 = smul.u32 32, %s14
      %p146 = scmp.lt.s32.totalorder %s145, 63
      %s147 = scalar_select %p146, %s145, 63
      %s148 = smul.addr %s147, 2
      %s149 = smul.addr %s148, 4
      %s150 = scalar_lea.vmem %s0, %s149
      %p151 = pneg %p35
      %p152 = pneg %p32
      %p153 = pneg %p56
      %p154 = pneg %p53
      %p155 = pneg %p77
      %p156 = pneg %p74
      %p157 = pneg %p103
      %p158 = pneg %p100
      %s159 = smul.u32 32, %s14
      %p160 = scmp.lt.s32.totalorder %s159, 63
      %s161 = scalar_select %p160, %s159, 63
      %s162 = smul.addr %s161, 8
      %s163 = scalar_lea.vmem %s3, %s162
      %s164 = smul.u32 32, %s14
      %p165 = scmp.lt.s32.totalorder %s164, 63
      %s166 = scalar_select %p165, %s164, 63
      %s167 = smul.addr %s166, 2
      %s168 = smul.addr %s167, 4
      %s169 = scalar_lea.vmem %s0, %s168
      %s170 = smul.u32 32, %s14
      %s171 = smul.u32 32, %s14
      %p172 = scmp.lt.s32.totalorder %s171, 63
      %s173 = scalar_select %p172, %s171, 63
      %s174 = smul.addr %s173, 8
      %s175 = scalar_lea.vmem %s3, %s174
      %s176 = smul.u32 32, %s14
      %v178 = vld [vmem:[%s169] sm:$0xff]
      %v179 = vld [vmem:[%s169 + $0x8] sm:$0xff]
      %v180 = vld [vmem:[%s169 + $0x10] sm:$0xff]
      %v181 = vld [vmem:[%s169 + $0x18] sm:$0xff]
      %v182 = vld [vmem:[%s169 + $0x20] sm:$0xff]
      %v183 = vld [vmem:[%s169 + $0x28] sm:$0xff]
      %v184 = vld [vmem:[%s169 + $0x30] sm:$0xff]
      %v185 = vld [vmem:[%s169 + $0x38] sm:$0xff]
      %v186 = vld [vmem:[%s169 + $0x40] sm:$0xff]
      %v187 = vld [vmem:[%s169 + $0x48] sm:$0xff]
      %v188 = vld [vmem:[%s169 + $0x50] sm:$0xff]
      %v189 = vld [vmem:[%s169 + $0x58] sm:$0xff]
      %v190 = vld [vmem:[%s169 + $0x60] sm:$0xff]
      %v191 = vld [vmem:[%s169 + $0x68] sm:$0xff]
      %v192 = vld [vmem:[%s169 + $0x70] sm:$0xff]
      %v193 = vld [vmem:[%s169 + $0x78] sm:$0xff]
      %v194 = vld [vmem:[%s169 + $0x80] sm:$0xff]
      %v195 = vld [vmem:[%s169 + $0x88] sm:$0xff]
      %v196 = vld [vmem:[%s169 + $0x90] sm:$0xff]
      %v197 = vld [vmem:[%s169 + $0x98] sm:$0xff]
      %v198 = vld [vmem:[%s169 + $0xa0] sm:$0xff]
      %v199 = vld [vmem:[%s169 + $0xa8] sm:$0xff]
      %v200 = vld [vmem:[%s169 + $0xb0] sm:$0xff]
      %v201 = vld [vmem:[%s169 + $0xb8] sm:$0xff]
      %v202 = vld [vmem:[%s169 + $0xc0] sm:$0xff]
      %v203 = vld [vmem:[%s169 + $0xc8] sm:$0xff]
      %v204 = vld [vmem:[%s169 + $0xd0] sm:$0xff]
      %v205 = vld [vmem:[%s169 + $0xd8] sm:$0xff]
      %v206 = vld [vmem:[%s169 + $0xe0] sm:$0xff]
      %v207 = vld [vmem:[%s169 + $0xe8] sm:$0xff]
      %v208 = vld [vmem:[%s169 + $0xf0] sm:$0xff]
      %v209 = vld [vmem:[%s169 + $0xf8] sm:$0xff]
      %v210 = vld [vmem:[%s1] sm:$0xf]
      %v211 = vld [vmem:[%s1 + $0x4] sm:$0xf]
      %v212 = vld [vmem:[%s1 + $0x8] sm:$0xf]
      %v213 = vld [vmem:[%s1 + $0xc] sm:$0xf]
      %v214 = vld [vmem:[%s1 + $0x10] sm:$0xf]
      %v215 = vld [vmem:[%s1 + $0x14] sm:$0xf]
      %v216 = vld [vmem:[%s1 + $0x18] sm:$0xf]
      %v217 = vld [vmem:[%s1 + $0x1c] sm:$0xf]
      %v218 = vld [vmem:[%s1 + $0x20] sm:$0xf]
      %v219 = vld [vmem:[%s1 + $0x24] sm:$0xf]
      %v220 = vld [vmem:[%s1 + $0x28] sm:$0xf]
      %v221 = vld [vmem:[%s1 + $0x2c] sm:$0xf]
      %v222 = vld [vmem:[%s1 + $0x30] sm:$0xf]
      %v223 = vld [vmem:[%s1 + $0x34] sm:$0xf]
      %v224 = vld [vmem:[%s1 + $0x38] sm:$0xf]
      %v225 = vld [vmem:[%s1 + $0x3c] sm:$0xf]
      %v226 = vld [vmem:[%s1 + $0x40] sm:$0xf]
      %v227 = vld [vmem:[%s1 + $0x44] sm:$0xf]
      %v228 = vld [vmem:[%s1 + $0x48] sm:$0x3]
      %v229 = vld [vmem:[%s2] sm:$0x1]
      %v231 = vlaneseq
      %v232 = vshrl.u32 %v231, 7
      %v233 = vsub.s32 0, %v232
      %v234 = vrot.slane %v229, %v233
      %v268 = vunpack.c.l.b16 %v178
      %v269 = vunpack.c.h.b16 %v178
      %v270 = vunpack.c.l.b16 %v179
      %v271 = vunpack.c.h.b16 %v179
      %v272 = vunpack.c.l.b16 %v180
      %v273 = vunpack.c.h.b16 %v180
      %v274 = vunpack.c.l.b16 %v181
      %v275 = vunpack.c.h.b16 %v181
      %v276 = vunpack.c.l.b16 %v182
      %v277 = vunpack.c.h.b16 %v182
      %v278 = vunpack.c.l.b16 %v183
      %v279 = vunpack.c.h.b16 %v183
      %v280 = vunpack.c.l.b16 %v184
      %v281 = vunpack.c.h.b16 %v184
      %v282 = vunpack.c.l.b16 %v185
      %v283 = vunpack.c.h.b16 %v185
      %v284 = vunpack.c.l.b16 %v186
      %v285 = vunpack.c.h.b16 %v186
      %v286 = vunpack.c.l.b16 %v187
      %v287 = vunpack.c.h.b16 %v187
      %v288 = vunpack.c.l.b16 %v188
      %v289 = vunpack.c.h.b16 %v188
      %v290 = vunpack.c.l.b16 %v189
      %v291 = vunpack.c.h.b16 %v189
      %v292 = vunpack.c.l.b16 %v190
      %v293 = vunpack.c.h.b16 %v190
      %v294 = vunpack.c.l.b16 %v191
      %v295 = vunpack.c.h.b16 %v191
      %v296 = vunpack.c.l.b16 %v192
      %v297 = vunpack.c.h.b16 %v192
      %v298 = vunpack.c.l.b16 %v193
      %v299 = vunpack.c.h.b16 %v193
      %v300 = vunpack.c.l.b16 %v194
      %v301 = vunpack.c.h.b16 %v194
      %v302 = vunpack.c.l.b16 %v195
      %v303 = vunpack.c.h.b16 %v195
      %v304 = vunpack.c.l.b16 %v196
      %v305 = vunpack.c.h.b16 %v196
      %v306 = vunpack.c.l.b16 %v197
      %v307 = vunpack.c.h.b16 %v197
      %v308 = vunpack.c.l.b16 %v198
      %v309 = vunpack.c.h.b16 %v198
      %v310 = vunpack.c.l.b16 %v199
      %v311 = vunpack.c.h.b16 %v199
      %v312 = vunpack.c.l.b16 %v200
      %v313 = vunpack.c.h.b16 %v200
      %v314 = vunpack.c.l.b16 %v201
      %v315 = vunpack.c.h.b16 %v201
      %v316 = vunpack.c.l.b16 %v202
      %v317 = vunpack.c.h.b16 %v202
      %v318 = vunpack.c.l.b16 %v203
      %v319 = vunpack.c.h.b16 %v203
      %v320 = vunpack.c.l.b16 %v204
      %v321 = vunpack.c.h.b16 %v204
      %v322 = vunpack.c.l.b16 %v205
      %v323 = vunpack.c.h.b16 %v205
      %v324 = vunpack.c.l.b16 %v206
      %v325 = vunpack.c.h.b16 %v206
      %v326 = vunpack.c.l.b16 %v207
      %v327 = vunpack.c.h.b16 %v207
      %v328 = vunpack.c.l.b16 %v208
      %v329 = vunpack.c.h.b16 %v208
      %v330 = vunpack.c.l.b16 %v209
      %v331 = vunpack.c.h.b16 %v209
      %v332 = vpack.c.b16 %v270, %v268
      %v333 = vpack.c.b16 %v271, %v269
      %v334 = vpack.c.b16 %v274, %v272
      %v335 = vpack.c.b16 %v275, %v273
      %v336 = vpack.c.b16 %v278, %v276
      %v337 = vpack.c.b16 %v279, %v277
      %v338 = vpack.c.b16 %v282, %v280
      %v339 = vpack.c.b16 %v283, %v281
      %v340 = vpack.c.b16 %v286, %v284
      %v341 = vpack.c.b16 %v287, %v285
      %v342 = vpack.c.b16 %v290, %v288
      %v343 = vpack.c.b16 %v291, %v289
      %v344 = vpack.c.b16 %v294, %v292
      %v345 = vpack.c.b16 %v295, %v293
      %v346 = vpack.c.b16 %v298, %v296
      %v347 = vpack.c.b16 %v299, %v297
      %v348 = vpack.c.b16 %v302, %v300
      %v349 = vpack.c.b16 %v303, %v301
      %v350 = vpack.c.b16 %v306, %v304
      %v351 = vpack.c.b16 %v307, %v305
      %v352 = vpack.c.b16 %v310, %v308
      %v353 = vpack.c.b16 %v311, %v309
      %v354 = vpack.c.b16 %v314, %v312
      %v355 = vpack.c.b16 %v315, %v313
      %v356 = vpack.c.b16 %v318, %v316
      %v357 = vpack.c.b16 %v319, %v317
      %v358 = vpack.c.b16 %v322, %v320
      %v359 = vpack.c.b16 %v323, %v321
      %v360 = vpack.c.b16 %v326, %v324
      %v361 = vpack.c.b16 %v327, %v325
      %v362 = vpack.c.b16 %v330, %v328
      %v363 = vpack.c.b16 %v331, %v329
      %v399 = vunpack.c.l.b16 %v210
      %v400 = vunpack.c.l.b16 %v211
      %v401 = vunpack.c.l.b16 %v212
      %v402 = vunpack.c.l.b16 %v213
      %v403 = vunpack.c.l.b16 %v214
      %v404 = vunpack.c.l.b16 %v215
      %v405 = vunpack.c.l.b16 %v216
      %v406 = vunpack.c.l.b16 %v217
      %v407 = vunpack.c.l.b16 %v218
      %v408 = vunpack.c.l.b16 %v219
      %v409 = vunpack.c.l.b16 %v220
      %v410 = vunpack.c.l.b16 %v221
      %v411 = vunpack.c.l.b16 %v222
      %v412 = vunpack.c.l.b16 %v223
      %v413 = vunpack.c.l.b16 %v224
      %v414 = vunpack.c.l.b16 %v225
      %v415 = vunpack.c.l.b16 %v226
      %v416 = vunpack.c.l.b16 %v227
      %v417 = vunpack.c.l.b16 %v228
      %v418 = vpack.c.b16 %v400, %v399
      %v419 = vpack.c.b16 %v402, %v401
      %v420 = vpack.c.b16 %v404, %v403
      %v421 = vpack.c.b16 %v406, %v405
      %v422 = vpack.c.b16 %v408, %v407
      %v423 = vpack.c.b16 %v410, %v409
      %v424 = vpack.c.b16 %v412, %v411
      %v425 = vpack.c.b16 %v414, %v413
      %v426 = vpack.c.b16 %v416, %v415
      %v427 = vpack.c.b16 %v417, %v417
      %vm437 = vcmask 154624
      %v439 = vsel %vm437, %v333, 0
      %v442 = vsel %vm437, %v335, 0
      %v445 = vsel %vm437, %v337, 0
      %v448 = vsel %vm437, %v339, 0
      %v451 = vsel %vm437, %v341, 0
      %v454 = vsel %vm437, %v343, 0
      %v457 = vsel %vm437, %v345, 0
      %v460 = vsel %vm437, %v347, 0
      %v463 = vsel %vm437, %v349, 0
      %v466 = vsel %vm437, %v351, 0
      %v469 = vsel %vm437, %v353, 0
      %v472 = vsel %vm437, %v355, 0
      %v475 = vsel %vm437, %v357, 0
      %v478 = vsel %vm437, %v359, 0
      %v481 = vsel %vm437, %v361, 0
      %v484 = vsel %vm437, %v363, 0
      %vm486 = vcmask 1040384
      %vm487 = vcmask 1041408
      %v488 = vsel %vm486, 4294967295, 65535
      %v489 = vsel %vm487, %v488, 0
      %v491 = vand.u32 %v427, %v489
      %493 = vmatprep.subr.bf16.mxu0 0
      %494 = vmatpush1.bf16.msra.mxu0 %v418
      %495 = vmatprep.subr.bf16.mxu0 0
      %496 = vmatpush1.bf16.msra.mxu0 %v419
      %497 = vmatprep.subr.bf16.mxu0 0
      %498 = vmatpush1.bf16.msra.mxu0 %v420
      %499 = vmatprep.subr.bf16.mxu0 0
      %500 = vmatpush1.bf16.msra.mxu0 %v421
      %501 = vmatprep.subr.bf16.mxu0 0
      %502 = vmatpush1.bf16.msra.mxu0 %v422
      %503 = vmatprep.subr.bf16.mxu0 0
      %504 = vmatpush1.bf16.msra.mxu0 %v423
      %505 = vmatprep.subr.bf16.mxu0 0
      %506 = vmatpush1.bf16.msra.mxu0 %v424
      %507 = vmatprep.subr.bf16.mxu0 0
      %508 = vmatpush1.bf16.msra.mxu0 %v425
      %509 = vmatprep.subr.bf16.mxu0 0
      %510 = vmatpush1.bf16.msra.mxu0 %v426
      %511 = vmatprep.subr.bf16.mxu0 0
      %512 = vmatpush1.bf16.msra.mxu0 %v491
      %513 = vmatprep.subr.bf16.mxu0 0
      %514 = vmatpush1.bf16.msra.mxu0 0
      %515 = vmatprep.subr.bf16.mxu0 0
      %516 = vmatpush1.bf16.msra.mxu0 0
      %517 = vmatprep.subr.bf16.mxu0 0
      %518 = vmatpush1.bf16.msra.mxu0 0
      %519 = vmatprep.subr.bf16.mxu0 0
      %520 = vmatpush1.bf16.msra.mxu0 0
      %521 = vmatprep.subr.bf16.mxu0 0
      %522 = vmatpush1.bf16.msra.mxu0 0
      %523 = vmatprep.subr.bf16.mxu0 0
      %524 = vmatpush1.bf16.msra.mxu0 0
      %525 = vmatprep.mubr.bf16.mxu0 %v439
      %526 = vmatmul.mubr.bf16.gmra.mrb[0].mxu0 %v332
      %v527 = vpop.f32.mrb[0].mxu0
      %v528 = vadd.f32 %v234, %v527
      %v529 = vpop.f32.mrb[0].mxu0
      %v530 = vpop.f32.mrb[0].mxu0
      %v531 = vadd.f32 %v234, %v530
      %v532 = vpop.f32.mrb[0].mxu0
      %533 = vmatprep.mubr.bf16.mxu0 %v442
      %534 = vmatmul.mubr.bf16.gmra.mrb[0].mxu0 %v334
      %v535 = vpop.f32.mrb[0].mxu0
      %v536 = vadd.f32 %v234, %v535
      %v537 = vpop.f32.mrb[0].mxu0
      %v538 = vpop.f32.mrb[0].mxu0
      %v539 = vadd.f32 %v234, %v538
      %v540 = vpop.f32.mrb[0].mxu0
      %541 = vmatprep.mubr.bf16.mxu0 %v445
      %542 = vmatmul.mubr.bf16.gmra.mrb[0].mxu0 %v336
      %v543 = vpop.f32.mrb[0].mxu0
      %v544 = vadd.f32 %v234, %v543
      %v545 = vpop.f32.mrb[0].mxu0
      %v546 = vpop.f32.mrb[0].mxu0
      %v547 = vadd.f32 %v234, %v546
      %v548 = vpop.f32.mrb[0].mxu0
      %549 = vmatprep.mubr.bf16.mxu0 %v448
      %550 = vmatmul.mubr.bf16.gmra.mrb[0].mxu0 %v338
      %v551 = vpop.f32.mrb[0].mxu0
      %v552 = vadd.f32 %v234, %v551
      %v553 = vpop.f32.mrb[0].mxu0
      %v554 = vpop.f32.mrb[0].mxu0
      %v555 = vadd.f32 %v234, %v554
      %v556 = vpop.f32.mrb[0].mxu0
      %557 = vmatprep.mubr.bf16.mxu0 %v451
      %558 = vmatmul.mubr.bf16.gmra.mrb[0].mxu0 %v340
      %v559 = vpop.f32.mrb[0].mxu0
      %v560 = vadd.f32 %v234, %v559
      %v561 = vpop.f32.mrb[0].mxu0
      %v562 = vpop.f32.mrb[0].mxu0
      %v563 = vadd.f32 %v234, %v562
      %v564 = vpop.f32.mrb[0].mxu0
      %565 = vmatprep.mubr.bf16.mxu0 %v454
      %566 = vmatmul.mubr.bf16.gmra.mrb[0].mxu0 %v342
      %v567 = vpop.f32.mrb[0].mxu0
      %v568 = vadd.f32 %v234, %v567
      %v569 = vpop.f32.mrb[0].mxu0
      %v570 = vpop.f32.mrb[0].mxu0
      %v571 = vadd.f32 %v234, %v570
      %v572 = vpop.f32.mrb[0].mxu0
      %573 = vmatprep.mubr.bf16.mxu0 %v457
      %574 = vmatmul.mubr.bf16.gmra.mrb[0].mxu0 %v344
      %v575 = vpop.f32.mrb[0].mxu0
      %v576 = vadd.f32 %v234, %v575
      %v577 = vpop.f32.mrb[0].mxu0
      %v578 = vpop.f32.mrb[0].mxu0
      %v579 = vadd.f32 %v234, %v578
      %v580 = vpop.f32.mrb[0].mxu0
      %581 = vmatprep.mubr.bf16.mxu0 %v460
      %582 = vmatmul.mubr.bf16.gmra.mrb[0].mxu0 %v346
      %v583 = vpop.f32.mrb[0].mxu0
      %v584 = vadd.f32 %v234, %v583
      %v585 = vpop.f32.mrb[0].mxu0
      %v586 = vpop.f32.mrb[0].mxu0
      %v587 = vadd.f32 %v234, %v586
      %v588 = vpop.f32.mrb[0].mxu0
      %589 = vmatprep.mubr.bf16.mxu0 %v463
      %590 = vmatmul.mubr.bf16.gmra.mrb[0].mxu0 %v348
      %v591 = vpop.f32.mrb[0].mxu0
      %v592 = vadd.f32 %v234, %v591
      %v593 = vpop.f32.mrb[0].mxu0
      %v594 = vpop.f32.mrb[0].mxu0
      %v595 = vadd.f32 %v234, %v594
      %v596 = vpop.f32.mrb[0].mxu0
      %597 = vmatprep.mubr.bf16.mxu0 %v466
      %598 = vmatmul.mubr.bf16.gmra.mrb[0].mxu0 %v350
      %v599 = vpop.f32.mrb[0].mxu0
      %v600 = vadd.f32 %v234, %v599
      %v601 = vpop.f32.mrb[0].mxu0
      %v602 = vpop.f32.mrb[0].mxu0
      %v603 = vadd.f32 %v234, %v602
      %v604 = vpop.f32.mrb[0].mxu0
      %605 = vmatprep.mubr.bf16.mxu0 %v469
      %606 = vmatmul.mubr.bf16.gmra.mrb[0].mxu0 %v352
      %v607 = vpop.f32.mrb[0].mxu0
      %v608 = vadd.f32 %v234, %v607
      %v609 = vpop.f32.mrb[0].mxu0
      %v610 = vpop.f32.mrb[0].mxu0
      %v611 = vadd.f32 %v234, %v610
      %v612 = vpop.f32.mrb[0].mxu0
      %613 = vmatprep.mubr.bf16.mxu0 %v472
      %614 = vmatmul.mubr.bf16.gmra.mrb[0].mxu0 %v354
      %v615 = vpop.f32.mrb[0].mxu0
      %v616 = vadd.f32 %v234, %v615
      %v617 = vpop.f32.mrb[0].mxu0
      %v618 = vpop.f32.mrb[0].mxu0
      %v619 = vadd.f32 %v234, %v618
      %v620 = vpop.f32.mrb[0].mxu0
      %621 = vmatprep.mubr.bf16.mxu0 %v475
      %622 = vmatmul.mubr.bf16.gmra.mrb[0].mxu0 %v356
      %v623 = vpop.f32.mrb[0].mxu0
      %v624 = vadd.f32 %v234, %v623
      %v625 = vpop.f32.mrb[0].mxu0
      %v626 = vpop.f32.mrb[0].mxu0
      %v627 = vadd.f32 %v234, %v626
      %v628 = vpop.f32.mrb[0].mxu0
      %629 = vmatprep.mubr.bf16.mxu0 %v478
      %630 = vmatmul.mubr.bf16.gmra.mrb[0].mxu0 %v358
      %v631 = vpop.f32.mrb[0].mxu0
      %v632 = vadd.f32 %v234, %v631
      %v633 = vpop.f32.mrb[0].mxu0
      %v634 = vpop.f32.mrb[0].mxu0
      %v635 = vadd.f32 %v234, %v634
      %v636 = vpop.f32.mrb[0].mxu0
      %637 = vmatprep.mubr.bf16.mxu0 %v481
      %638 = vmatmul.mubr.bf16.gmra.mrb[0].mxu0 %v360
      %v639 = vpop.f32.mrb[0].mxu0
      %v640 = vadd.f32 %v234, %v639
      %v641 = vpop.f32.mrb[0].mxu0
      %v642 = vpop.f32.mrb[0].mxu0
      %v643 = vadd.f32 %v234, %v642
      %v644 = vpop.f32.mrb[0].mxu0
      %645 = vmatprep.mubr.bf16.mxu0 %v484
      %646 = vmatmul.mubr.bf16.gmra.mrb[0].mxu0 %v362
      %v647 = vpop.f32.mrb[0].mxu0
      %v648 = vadd.f32 %v234, %v647
      %v649 = vpop.f32.mrb[0].mxu0
      %v650 = vpop.f32.mrb[0].mxu0
      %v651 = vadd.f32 %v234, %v650
      %v652 = vpop.f32.mrb[0].mxu0
      %653 = vdwg.mxu0
      %vm654 = vcmp.gt.f32.partialorder %v528, 0.0
      %vm655 = vcmp.gt.f32.partialorder %v531, 0.0
      %vm656 = vcmp.gt.f32.partialorder %v536, 0.0
      %vm657 = vcmp.gt.f32.partialorder %v539, 0.0
      %vm658 = vcmp.gt.f32.partialorder %v544, 0.0
      %vm659 = vcmp.gt.f32.partialorder %v547, 0.0
      %vm660 = vcmp.gt.f32.partialorder %v552, 0.0
      %vm661 = vcmp.gt.f32.partialorder %v555, 0.0
      %vm662 = vcmp.gt.f32.partialorder %v560, 0.0
      %vm663 = vcmp.gt.f32.partialorder %v563, 0.0
      %vm664 = vcmp.gt.f32.partialorder %v568, 0.0
      %vm665 = vcmp.gt.f32.partialorder %v571, 0.0
      %vm666 = vcmp.gt.f32.partialorder %v576, 0.0
      %vm667 = vcmp.gt.f32.partialorder %v579, 0.0
      %vm668 = vcmp.gt.f32.partialorder %v584, 0.0
      %vm669 = vcmp.gt.f32.partialorder %v587, 0.0
      %vm670 = vcmp.gt.f32.partialorder %v592, 0.0
      %vm671 = vcmp.gt.f32.partialorder %v595, 0.0
      %vm672 = vcmp.gt.f32.partialorder %v600, 0.0
      %vm673 = vcmp.gt.f32.partialorder %v603, 0.0
      %vm674 = vcmp.gt.f32.partialorder %v608, 0.0
      %vm675 = vcmp.gt.f32.partialorder %v611, 0.0
      %vm676 = vcmp.gt.f32.partialorder %v616, 0.0
      %vm677 = vcmp.gt.f32.partialorder %v619, 0.0
      %vm678 = vcmp.gt.f32.partialorder %v624, 0.0
      %vm679 = vcmp.gt.f32.partialorder %v627, 0.0
      %vm680 = vcmp.gt.f32.partialorder %v632, 0.0
      %vm681 = vcmp.gt.f32.partialorder %v635, 0.0
      %vm682 = vcmp.gt.f32.partialorder %v640, 0.0
      %vm683 = vcmp.gt.f32.partialorder %v643, 0.0
      %vm684 = vcmp.gt.f32.partialorder %v648, 0.0
      %vm685 = vcmp.gt.f32.partialorder %v651, 0.0
      %v686 = vmin.f32 %v528, 0.0
      %v687 = vmin.f32 %v531, 0.0
      %v688 = vmin.f32 %v536, 0.0
      %v689 = vmin.f32 %v539, 0.0
      %v690 = vmin.f32 %v544, 0.0
      %v691 = vmin.f32 %v547, 0.0
      %v692 = vmin.f32 %v552, 0.0
      %v693 = vmin.f32 %v555, 0.0
      %v694 = vmin.f32 %v560, 0.0
      %v695 = vmin.f32 %v563, 0.0
      %v696 = vmin.f32 %v568, 0.0
      %v697 = vmin.f32 %v571, 0.0
      %v698 = vmin.f32 %v576, 0.0
      %v699 = vmin.f32 %v579, 0.0
      %v700 = vmin.f32 %v584, 0.0
      %v701 = vmin.f32 %v587, 0.0
      %v702 = vmin.f32 %v592, 0.0
      %v703 = vmin.f32 %v595, 0.0
      %v704 = vmin.f32 %v600, 0.0
      %v705 = vmin.f32 %v603, 0.0
      %v706 = vmin.f32 %v608, 0.0
      %v707 = vmin.f32 %v611, 0.0
      %v708 = vmin.f32 %v616, 0.0
      %v709 = vmin.f32 %v619, 0.0
      %v710 = vmin.f32 %v624, 0.0
      %v711 = vmin.f32 %v627, 0.0
      %v712 = vmin.f32 %v632, 0.0
      %v713 = vmin.f32 %v635, 0.0
      %v714 = vmin.f32 %v640, 0.0
      %v715 = vmin.f32 %v643, 0.0
      %v716 = vmin.f32 %v648, 0.0
      %v717 = vmin.f32 %v651, 0.0
      %v718 = vmul.f32 %v686, 1.442695
      %v719 = vpow.pop %v718
      %v720 = vmul.f32 %v687, 1.442695
      %v721 = vpow.pop %v720
      %v722 = vmul.f32 %v688, 1.442695
      %v723 = vpow.pop %v722
      %v724 = vmul.f32 %v689, 1.442695
      %v725 = vpow.pop %v724
      %v726 = vmul.f32 %v690, 1.442695
      %v727 = vpow.pop %v726
      %v728 = vmul.f32 %v691, 1.442695
      %v729 = vpow.pop %v728
      %v730 = vmul.f32 %v692, 1.442695
      %v731 = vpow.pop %v730
      %v732 = vmul.f32 %v693, 1.442695
      %v733 = vpow.pop %v732
      %v734 = vmul.f32 %v694, 1.442695
      %v735 = vpow.pop %v734
      %v736 = vmul.f32 %v695, 1.442695
      %v737 = vpow.pop %v736
      %v738 = vmul.f32 %v696, 1.442695
      %v739 = vpow.pop %v738
      %v740 = vmul.f32 %v697, 1.442695
      %v741 = vpow.pop %v740
      %v742 = vmul.f32 %v698, 1.442695
      %v743 = vpow.pop %v742
      %v744 = vmul.f32 %v699, 1.442695
      %v745 = vpow.pop %v744
      %v746 = vmul.f32 %v700, 1.442695
      %v747 = vpow.pop %v746
      %v748 = vmul.f32 %v701, 1.442695
      %v749 = vpow.pop %v748
      %v750 = vmul.f32 %v702, 1.442695
      %v751 = vpow.pop %v750
      %v752 = vmul.f32 %v703, 1.442695
      %v753 = vpow.pop %v752
      %v754 = vmul.f32 %v704, 1.442695
      %v755 = vpow.pop %v754
      %v756 = vmul.f32 %v705, 1.442695
      %v757 = vpow.pop %v756
      %v758 = vmul.f32 %v706, 1.442695
      %v759 = vpow.pop %v758
      %v760 = vmul.f32 %v707, 1.442695
      %v761 = vpow.pop %v760
      %v762 = vmul.f32 %v708, 1.442695
      %v763 = vpow.pop %v762
      %v764 = vmul.f32 %v709, 1.442695
      %v765 = vpow.pop %v764
      %v766 = vmul.f32 %v710, 1.442695
      %v767 = vpow.pop %v766
      %v768 = vmul.f32 %v711, 1.442695
      %v769 = vpow.pop %v768
      %v770 = vmul.f32 %v712, 1.442695
      %v771 = vpow.pop %v770
      %v772 = vmul.f32 %v713, 1.442695
      %v773 = vpow.pop %v772
      %v774 = vmul.f32 %v714, 1.442695
      %v775 = vpow.pop %v774
      %v776 = vmul.f32 %v715, 1.442695
      %v777 = vpow.pop %v776
      %v778 = vmul.f32 %v716, 1.442695
      %v779 = vpow.pop %v778
      %v780 = vmul.f32 %v717, 1.442695
      %v781 = vpow.pop %v780
      %v782 = vsub.f32 %v719, 1.0
      %v783 = vsub.f32 %v721, 1.0
      %v784 = vsub.f32 %v723, 1.0
      %v785 = vsub.f32 %v725, 1.0
      %v786 = vsub.f32 %v727, 1.0
      %v787 = vsub.f32 %v729, 1.0
      %v788 = vsub.f32 %v731, 1.0
      %v789 = vsub.f32 %v733, 1.0
      %v790 = vsub.f32 %v735, 1.0
      %v791 = vsub.f32 %v737, 1.0
      %v792 = vsub.f32 %v739, 1.0
      %v793 = vsub.f32 %v741, 1.0
      %v794 = vsub.f32 %v743, 1.0
      %v795 = vsub.f32 %v745, 1.0
      %v796 = vsub.f32 %v747, 1.0
      %v797 = vsub.f32 %v749, 1.0
      %v798 = vsub.f32 %v751, 1.0
      %v799 = vsub.f32 %v753, 1.0
      %v800 = vsub.f32 %v755, 1.0
      %v801 = vsub.f32 %v757, 1.0
      %v802 = vsub.f32 %v759, 1.0
      %v803 = vsub.f32 %v761, 1.0
      %v804 = vsub.f32 %v763, 1.0
      %v805 = vsub.f32 %v765, 1.0
      %v806 = vsub.f32 %v767, 1.0
      %v807 = vsub.f32 %v769, 1.0
      %v808 = vsub.f32 %v771, 1.0
      %v809 = vsub.f32 %v773, 1.0
      %v810 = vsub.f32 %v775, 1.0
      %v811 = vsub.f32 %v777, 1.0
      %v812 = vsub.f32 %v779, 1.0
      %v813 = vsub.f32 %v781, 1.0
      %v814 = vsel %vm654, %v528, %v782
      %v815 = vsel %vm655, %v531, %v783
      %v816 = vsel %vm656, %v536, %v784
      %v817 = vsel %vm657, %v539, %v785
      %v818 = vsel %vm658, %v544, %v786
      %v819 = vsel %vm659, %v547, %v787
      %v820 = vsel %vm660, %v552, %v788
      %v821 = vsel %vm661, %v555, %v789
      %v822 = vsel %vm662, %v560, %v790
      %v823 = vsel %vm663, %v563, %v791
      %v824 = vsel %vm664, %v568, %v792
      %v825 = vsel %vm665, %v571, %v793
      %v826 = vsel %vm666, %v576, %v794
      %v827 = vsel %vm667, %v579, %v795
      %v828 = vsel %vm668, %v584, %v796
      %v829 = vsel %vm669, %v587, %v797
      %v830 = vsel %vm670, %v592, %v798
      %v831 = vsel %vm671, %v595, %v799
      %v832 = vsel %vm672, %v600, %v800
      %v833 = vsel %vm673, %v603, %v801
      %v834 = vsel %vm674, %v608, %v802
      %v835 = vsel %vm675, %v611, %v803
      %v836 = vsel %vm676, %v616, %v804
      %v837 = vsel %vm677, %v619, %v805
      %v838 = vsel %vm678, %v624, %v806
      %v839 = vsel %vm679, %v627, %v807
      %v840 = vsel %vm680, %v632, %v808
      %v841 = vsel %vm681, %v635, %v809
      %v842 = vsel %vm682, %v640, %v810
      %v843 = vsel %vm683, %v643, %v811
      %v844 = vsel %vm684, %v648, %v812
      %v845 = vsel %vm685, %v651, %v813
      %v846 = vxor.u32 %v528, 2147483648
      %v847 = vxor.u32 %v531, 2147483648
      %v848 = vxor.u32 %v536, 2147483648
      %v849 = vxor.u32 %v539, 2147483648
      %v850 = vxor.u32 %v544, 2147483648
      %v851 = vxor.u32 %v547, 2147483648
      %v852 = vxor.u32 %v552, 2147483648
      %v853 = vxor.u32 %v555, 2147483648
      %v854 = vxor.u32 %v560, 2147483648
      %v855 = vxor.u32 %v563, 2147483648
      %v856 = vxor.u32 %v568, 2147483648
      %v857 = vxor.u32 %v571, 2147483648
      %v858 = vxor.u32 %v576, 2147483648
      %v859 = vxor.u32 %v579, 2147483648
      %v860 = vxor.u32 %v584, 2147483648
      %v861 = vxor.u32 %v587, 2147483648
      %v862 = vxor.u32 %v592, 2147483648
      %v863 = vxor.u32 %v595, 2147483648
      %v864 = vxor.u32 %v600, 2147483648
      %v865 = vxor.u32 %v603, 2147483648
      %v866 = vxor.u32 %v608, 2147483648
      %v867 = vxor.u32 %v611, 2147483648
      %v868 = vxor.u32 %v616, 2147483648
      %v869 = vxor.u32 %v619, 2147483648
      %v870 = vxor.u32 %v624, 2147483648
      %v871 = vxor.u32 %v627, 2147483648
      %v872 = vxor.u32 %v632, 2147483648
      %v873 = vxor.u32 %v635, 2147483648
      %v874 = vxor.u32 %v640, 2147483648
      %v875 = vxor.u32 %v643, 2147483648
      %v876 = vxor.u32 %v648, 2147483648
      %v877 = vxor.u32 %v651, 2147483648
      %v878 = vmul.f32 %v846, 1.442695
      %v879 = vpow.pop %v878
      %v880 = vmul.f32 %v847, 1.442695
      %v881 = vpow.pop %v880
      %v882 = vmul.f32 %v848, 1.442695
      %v883 = vpow.pop %v882
      %v884 = vmul.f32 %v849, 1.442695
      %v885 = vpow.pop %v884
      %v886 = vmul.f32 %v850, 1.442695
      %v887 = vpow.pop %v886
      %v888 = vmul.f32 %v851, 1.442695
      %v889 = vpow.pop %v888
      %v890 = vmul.f32 %v852, 1.442695
      %v891 = vpow.pop %v890
      %v892 = vmul.f32 %v853, 1.442695
      %v893 = vpow.pop %v892
      %v894 = vmul.f32 %v854, 1.442695
      %v895 = vpow.pop %v894
      %v896 = vmul.f32 %v855, 1.442695
      %v897 = vpow.pop %v896
      %v898 = vmul.f32 %v856, 1.442695
      %v899 = vpow.pop %v898
      %v900 = vmul.f32 %v857, 1.442695
      %v901 = vpow.pop %v900
      %v902 = vmul.f32 %v858, 1.442695
      %v903 = vpow.pop %v902
      %v904 = vmul.f32 %v859, 1.442695
      %v905 = vpow.pop %v904
      %v906 = vmul.f32 %v860, 1.442695
      %v907 = vpow.pop %v906
      %v908 = vmul.f32 %v861, 1.442695
      %v909 = vpow.pop %v908
      %v910 = vmul.f32 %v862, 1.442695
      %v911 = vpow.pop %v910
      %v912 = vmul.f32 %v863, 1.442695
      %v913 = vpow.pop %v912
      %v914 = vmul.f32 %v864, 1.442695
      %v915 = vpow.pop %v914
      %v916 = vmul.f32 %v865, 1.442695
      %v917 = vpow.pop %v916
      %v918 = vmul.f32 %v866, 1.442695
      %v919 = vpow.pop %v918
      %v920 = vmul.f32 %v867, 1.442695
      %v921 = vpow.pop %v920
      %v922 = vmul.f32 %v868, 1.442695
      %v923 = vpow.pop %v922
      %v924 = vmul.f32 %v869, 1.442695
      %v925 = vpow.pop %v924
      %v926 = vmul.f32 %v870, 1.442695
      %v927 = vpow.pop %v926
      %v928 = vmul.f32 %v871, 1.442695
      %v929 = vpow.pop %v928
      %v930 = vmul.f32 %v872, 1.442695
      %v931 = vpow.pop %v930
      %v932 = vmul.f32 %v873, 1.442695
      %v933 = vpow.pop %v932
      %v934 = vmul.f32 %v874, 1.442695
      %v935 = vpow.pop %v934
      %v936 = vmul.f32 %v875, 1.442695
      %v937 = vpow.pop %v936
      %v938 = vmul.f32 %v876, 1.442695
      %v939 = vpow.pop %v938
      %v940 = vmul.f32 %v877, 1.442695
      %v941 = vpow.pop %v940
      %v942 = vadd.f32 %v879, 1.0
      %v943 = vadd.f32 %v881, 1.0
      %v944 = vadd.f32 %v883, 1.0
      %v945 = vadd.f32 %v885, 1.0
      %v946 = vadd.f32 %v887, 1.0
      %v947 = vadd.f32 %v889, 1.0
      %v948 = vadd.f32 %v891, 1.0
      %v949 = vadd.f32 %v893, 1.0
      %v950 = vadd.f32 %v895, 1.0
      %v951 = vadd.f32 %v897, 1.0
      %v952 = vadd.f32 %v899, 1.0
      %v953 = vadd.f32 %v901, 1.0
      %v954 = vadd.f32 %v903, 1.0
      %v955 = vadd.f32 %v905, 1.0
      %v956 = vadd.f32 %v907, 1.0
      %v957 = vadd.f32 %v909, 1.0
      %v958 = vadd.f32 %v911, 1.0
      %v959 = vadd.f32 %v913, 1.0
      %v960 = vadd.f32 %v915, 1.0
      %v961 = vadd.f32 %v917, 1.0
      %v962 = vadd.f32 %v919, 1.0
      %v963 = vadd.f32 %v921, 1.0
      %v964 = vadd.f32 %v923, 1.0
      %v965 = vadd.f32 %v925, 1.0
      %v966 = vadd.f32 %v927, 1.0
      %v967 = vadd.f32 %v929, 1.0
      %v968 = vadd.f32 %v931, 1.0
      %v969 = vadd.f32 %v933, 1.0
      %v970 = vadd.f32 %v935, 1.0
      %v971 = vadd.f32 %v937, 1.0
      %v972 = vadd.f32 %v939, 1.0
      %v973 = vadd.f32 %v941, 1.0
      %v974 = vrcp.pop %v942
      %v975 = vmul.f32 1.0, %v974
      %v976 = vrcp.pop %v943
      %v977 = vmul.f32 1.0, %v976
      %v978 = vrcp.pop %v944
      %v979 = vmul.f32 1.0, %v978
      %v980 = vrcp.pop %v945
      %v981 = vmul.f32 1.0, %v980
      %v982 = vrcp.pop %v946
      %v983 = vmul.f32 1.0, %v982
      %v984 = vrcp.pop %v947
      %v985 = vmul.f32 1.0, %v984
      %v986 = vrcp.pop %v948
      %v987 = vmul.f32 1.0, %v986
      %v988 = vrcp.pop %v949
      %v989 = vmul.f32 1.0, %v988
      %v990 = vrcp.pop %v950
      %v991 = vmul.f32 1.0, %v990
      %v992 = vrcp.pop %v951
      %v993 = vmul.f32 1.0, %v992
      %v994 = vrcp.pop %v952
      %v995 = vmul.f32 1.0, %v994
      %v996 = vrcp.pop %v953
      %v997 = vmul.f32 1.0, %v996
      %v998 = vrcp.pop %v954
      %v999 = vmul.f32 1.0, %v998
      %v1000 = vrcp.pop %v955
      %v1001 = vmul.f32 1.0, %v1000
      %v1002 = vrcp.pop %v956
      %v1003 = vmul.f32 1.0, %v1002
      %v1004 = vrcp.pop %v957
      %v1005 = vmul.f32 1.0, %v1004
      %v1006 = vrcp.pop %v958
      %v1007 = vmul.f32 1.0, %v1006
      %v1008 = vrcp.pop %v959
      %v1009 = vmul.f32 1.0, %v1008
      %v1010 = vrcp.pop %v960
      %v1011 = vmul.f32 1.0, %v1010
      %v1012 = vrcp.pop %v961
      %v1013 = vmul.f32 1.0, %v1012
      %v1014 = vrcp.pop %v962
      %v1015 = vmul.f32 1.0, %v1014
      %v1016 = vrcp.pop %v963
      %v1017 = vmul.f32 1.0, %v1016
      %v1018 = vrcp.pop %v964
      %v1019 = vmul.f32 1.0, %v1018
      %v1020 = vrcp.pop %v965
      %v1021 = vmul.f32 1.0, %v1020
      %v1022 = vrcp.pop %v966
      %v1023 = vmul.f32 1.0, %v1022
      %v1024 = vrcp.pop %v967
      %v1025 = vmul.f32 1.0, %v1024
      %v1026 = vrcp.pop %v968
      %v1027 = vmul.f32 1.0, %v1026
      %v1028 = vrcp.pop %v969
      %v1029 = vmul.f32 1.0, %v1028
      %v1030 = vrcp.pop %v970
      %v1031 = vmul.f32 1.0, %v1030
      %v1032 = vrcp.pop %v971
      %v1033 = vmul.f32 1.0, %v1032
      %v1034 = vrcp.pop %v972
      %v1035 = vmul.f32 1.0, %v1034
      %v1036 = vrcp.pop %v973
      %v1037 = vmul.f32 1.0, %v1036
      %1070 = vrot.lane.b32.xlu0 %v975, 64
      %v1071 = vpop.permute.xlu0 %1070
      %1072 = vrot.lane.b32.xlu0 %v977, 64
      %v1073 = vpop.permute.xlu0 %1072
      %1074 = vrot.lane.b32.xlu0 %v979, 64
      %v1075 = vpop.permute.xlu0 %1074
      %1076 = vrot.lane.b32.xlu0 %v981, 64
      %v1077 = vpop.permute.xlu0 %1076
      %1078 = vrot.lane.b32.xlu0 %v983, 64
      %v1079 = vpop.permute.xlu0 %1078
      %1080 = vrot.lane.b32.xlu0 %v985, 64
      %v1081 = vpop.permute.xlu0 %1080
      %1082 = vrot.lane.b32.xlu0 %v987, 64
      %v1083 = vpop.permute.xlu0 %1082
      %1084 = vrot.lane.b32.xlu0 %v989, 64
      %v1085 = vpop.permute.xlu0 %1084
      %1086 = vrot.lane.b32.xlu0 %v991, 64
      %v1087 = vpop.permute.xlu0 %1086
      %1088 = vrot.lane.b32.xlu0 %v993, 64
      %v1089 = vpop.permute.xlu0 %1088
      %1090 = vrot.lane.b32.xlu0 %v995, 64
      %v1091 = vpop.permute.xlu0 %1090
      %1092 = vrot.lane.b32.xlu0 %v997, 64
      %v1093 = vpop.permute.xlu0 %1092
      %1094 = vrot.lane.b32.xlu0 %v999, 64
      %v1095 = vpop.permute.xlu0 %1094
      %1096 = vrot.lane.b32.xlu0 %v1001, 64
      %v1097 = vpop.permute.xlu0 %1096
      %1098 = vrot.lane.b32.xlu0 %v1003, 64
      %v1099 = vpop.permute.xlu0 %1098
      %1100 = vrot.lane.b32.xlu0 %v1005, 64
      %v1101 = vpop.permute.xlu0 %1100
      %1102 = vrot.lane.b32.xlu0 %v1007, 64
      %v1103 = vpop.permute.xlu0 %1102
      %1104 = vrot.lane.b32.xlu0 %v1009, 64
      %v1105 = vpop.permute.xlu0 %1104
      %1106 = vrot.lane.b32.xlu0 %v1011, 64
      %v1107 = vpop.permute.xlu0 %1106
      %1108 = vrot.lane.b32.xlu0 %v1013, 64
      %v1109 = vpop.permute.xlu0 %1108
      %1110 = vrot.lane.b32.xlu0 %v1015, 64
      %v1111 = vpop.permute.xlu0 %1110
      %1112 = vrot.lane.b32.xlu0 %v1017, 64
      %v1113 = vpop.permute.xlu0 %1112
      %1114 = vrot.lane.b32.xlu0 %v1019, 64
      %v1115 = vpop.permute.xlu0 %1114
      %1116 = vrot.lane.b32.xlu0 %v1021, 64
      %v1117 = vpop.permute.xlu0 %1116
      %1118 = vrot.lane.b32.xlu0 %v1023, 64
      %v1119 = vpop.permute.xlu0 %1118
      %1120 = vrot.lane.b32.xlu0 %v1025, 64
      %v1121 = vpop.permute.xlu0 %1120
      %1122 = vrot.lane.b32.xlu0 %v1027, 64
      %v1123 = vpop.permute.xlu0 %1122
      %1124 = vrot.lane.b32.xlu0 %v1029, 64
      %v1125 = vpop.permute.xlu0 %1124
      %1126 = vrot.lane.b32.xlu0 %v1031, 64
      %v1127 = vpop.permute.xlu0 %1126
      %1128 = vrot.lane.b32.xlu0 %v1033, 64
      %v1129 = vpop.permute.xlu0 %1128
      %1130 = vrot.lane.b32.xlu0 %v1035, 64
      %v1131 = vpop.permute.xlu0 %1130
      %1132 = vrot.lane.b32.xlu0 %v1037, 64
      %v1133 = vpop.permute.xlu0 %1132
      %v1166 = vmul.f32 %v814, %v1071
      %v1167 = vmul.f32 %v815, %v1073
      %v1168 = vmul.f32 %v816, %v1075
      %v1169 = vmul.f32 %v817, %v1077
      %v1170 = vmul.f32 %v818, %v1079
      %v1171 = vmul.f32 %v819, %v1081
      %v1172 = vmul.f32 %v820, %v1083
      %v1173 = vmul.f32 %v821, %v1085
      %v1174 = vmul.f32 %v822, %v1087
      %v1175 = vmul.f32 %v823, %v1089
      %v1176 = vmul.f32 %v824, %v1091
      %v1177 = vmul.f32 %v825, %v1093
      %v1178 = vmul.f32 %v826, %v1095
      %v1179 = vmul.f32 %v827, %v1097
      %v1180 = vmul.f32 %v828, %v1099
      %v1181 = vmul.f32 %v829, %v1101
      %v1182 = vmul.f32 %v830, %v1103
      %v1183 = vmul.f32 %v831, %v1105
      %v1184 = vmul.f32 %v832, %v1107
      %v1185 = vmul.f32 %v833, %v1109
      %v1186 = vmul.f32 %v834, %v1111
      %v1187 = vmul.f32 %v835, %v1113
      %v1188 = vmul.f32 %v836, %v1115
      %v1189 = vmul.f32 %v837, %v1117
      %v1190 = vmul.f32 %v838, %v1119
      %v1191 = vmul.f32 %v839, %v1121
      %v1192 = vmul.f32 %v840, %v1123
      %v1193 = vmul.f32 %v841, %v1125
      %v1194 = vmul.f32 %v842, %v1127
      %v1195 = vmul.f32 %v843, %v1129
      %v1196 = vmul.f32 %v844, %v1131
      %v1197 = vmul.f32 %v845, %v1133
      %vm1198 = vcmask 523264
      %1199 = vst.msk [vmem:[%s175] sm:$0xff] %vm1198, %v1166
      %1200 = vst.msk [vmem:[%s175 + $0x8] sm:$0xff] %vm1198, %v1167
      %1201 = vst.msk [vmem:[%s175 + $0x10] sm:$0xff] %vm1198, %v1168
      %1202 = vst.msk [vmem:[%s175 + $0x18] sm:$0xff] %vm1198, %v1169
      %1203 = vst.msk [vmem:[%s175 + $0x20] sm:$0xff] %vm1198, %v1170
      %1204 = vst.msk [vmem:[%s175 + $0x28] sm:$0xff] %vm1198, %v1171
      %1205 = vst.msk [vmem:[%s175 + $0x30] sm:$0xff] %vm1198, %v1172
      %1206 = vst.msk [vmem:[%s175 + $0x38] sm:$0xff] %vm1198, %v1173
      %1207 = vst.msk [vmem:[%s175 + $0x40] sm:$0xff] %vm1198, %v1174
      %1208 = vst.msk [vmem:[%s175 + $0x48] sm:$0xff] %vm1198, %v1175
      %1209 = vst.msk [vmem:[%s175 + $0x50] sm:$0xff] %vm1198, %v1176
      %1210 = vst.msk [vmem:[%s175 + $0x58] sm:$0xff] %vm1198, %v1177
      %1211 = vst.msk [vmem:[%s175 + $0x60] sm:$0xff] %vm1198, %v1178
      %1212 = vst.msk [vmem:[%s175 + $0x68] sm:$0xff] %vm1198, %v1179
      %1213 = vst.msk [vmem:[%s175 + $0x70] sm:$0xff] %vm1198, %v1180
      %1214 = vst.msk [vmem:[%s175 + $0x78] sm:$0xff] %vm1198, %v1181
      %1215 = vst.msk [vmem:[%s175 + $0x80] sm:$0xff] %vm1198, %v1182
      %1216 = vst.msk [vmem:[%s175 + $0x88] sm:$0xff] %vm1198, %v1183
      %1217 = vst.msk [vmem:[%s175 + $0x90] sm:$0xff] %vm1198, %v1184
      %1218 = vst.msk [vmem:[%s175 + $0x98] sm:$0xff] %vm1198, %v1185
      %1219 = vst.msk [vmem:[%s175 + $0xa0] sm:$0xff] %vm1198, %v1186
      %1220 = vst.msk [vmem:[%s175 + $0xa8] sm:$0xff] %vm1198, %v1187
      %1221 = vst.msk [vmem:[%s175 + $0xb0] sm:$0xff] %vm1198, %v1188
      %1222 = vst.msk [vmem:[%s175 + $0xb8] sm:$0xff] %vm1198, %v1189
      %1223 = vst.msk [vmem:[%s175 + $0xc0] sm:$0xff] %vm1198, %v1190
      %1224 = vst.msk [vmem:[%s175 + $0xc8] sm:$0xff] %vm1198, %v1191
      %1225 = vst.msk [vmem:[%s175 + $0xd0] sm:$0xff] %vm1198, %v1192
      %1226 = vst.msk [vmem:[%s175 + $0xd8] sm:$0xff] %vm1198, %v1193
      %1227 = vst.msk [vmem:[%s175 + $0xe0] sm:$0xff] %vm1198, %v1194
      %1228 = vst.msk [vmem:[%s175 + $0xe8] sm:$0xff] %vm1198, %v1195
      %1229 = vst.msk [vmem:[%s175 + $0xf0] sm:$0xff] %vm1198, %v1196
      %1230 = vst.msk [vmem:[%s175 + $0xf8] sm:$0xff] %vm1198, %v1197
      %s1231 = smul.u32 32, %s14
      %p1232 = scmp.lt.s32.totalorder %s1231, 63
      %s1233 = scalar_select %p1232, %s1231, 63
      %s1234 = smul.addr %s1233, 8
      %s1235 = scalar_lea.vmem %s3, %s1234
      // Predicated region
      $region33: #{tpu_custom_call.1} parent=31 // pred_check
        %p1236 = pneg %p100
      $region34: #{tpu_custom_call.1} parent=31 // pred_check_branch
        %1238 = sbr.rel (%p1236) target = $region36
      $region35: #{tpu_custom_call.1} parent=31 // pred_region
        %s1239 = smul.u32 32, %s14
      $region36: #{tpu_custom_call.1} parent=31 // pred_fallthru
        _
    $region32: #{tpu_custom_call.1} parent=5 // pred_fallthru
      _
    %p1240 = scmp.le.s32.totalorder 2, %s9
    // Predicated region
    $region37: #{tpu_custom_call.1} parent=5 // pred_check
      %p1241 = pneg %p1240
    $region38: #{tpu_custom_call.1} parent=5 // pred_check_branch
      %1243 = sbr.rel (%p1241) target = $region40
    $region39: #{tpu_custom_call.1} parent=5 // pred_region
      %s1244 = ssub.s32 %s9, 2
      // Predicated region
      $region41: #{tpu_custom_call.1} parent=39 // pred_check
        %p1245 = pneg %p106
      $region42: #{tpu_custom_call.1} parent=39 // pred_check_branch
        %1247 = sbr.rel (%p1245) target = $region44
      $region43: #{tpu_custom_call.1} parent=39 // pred_region
        %s1248 = smul.u32 32, %s15
        %p1249 = scmp.lt.s32.totalorder %s1248, 63
        %s1250 = scalar_select %p1249, %s1248, 63
        %s1251 = smul.addr %s1250, 8
        %s1252 = scalar_lea.vmem %s3, %s1251
      $region44: #{tpu_custom_call.1} parent=39 // pred_fallthru
        _
    $region40: #{tpu_custom_call.1} parent=5 // pred_fallthru
      _
  $region6: #{tpu_custom_call.1} parent=0 // loop_footer
    %s13 = sadd.s32 1, %s9
  $region7: #{tpu_custom_call.1} parent=0 // loop_footer_branch
    %8 = sbr.rel target = $region3
  $region8: #{tpu_custom_call.1} parent=0 // loop_exit
    _

</llo_original>
